<compile_context>
chip_gen: v7x
topology: tpu7x:2x2x1
jax: 0.10.0
libtpu: 0.0.40
codegen_flags: <defaults>
</compile_context>

<pallas_src>
import jax
import jax.numpy as jnp
import numpy as np
from jax import lax
from jax.experimental import pallas as pl
from jax.experimental.pallas import tpu as pltpu

# ---- "config" constants (AdaptiveReasoningConfig stand-in) -------------------
NUM_STRATEGIES = 11            # len(ReasoningStrategy)
DEFAULT_STRATEGY_IDX = 0       # ReasoningStrategy.DEFAULT.value - 1
TEMPERATURE = 0.8
SELECTION_THRESHOLD = 0.2
ENABLED = True

# ---- model sizes --------------------------------------------------------------
B, S, H = 1, 8, 32             # forward's .item() calls imply batch == 1
E = 16                         # config.strategy_embeddings_size
HH = H // 2                    # hidden_size // 2
NS = NUM_STRATEGIES


# ------------------------------------------------------------------------------
# Fused kernel.
#
# Packed weight slabs (built once in the wrapper):
#   sel_w  [H+1, HH+NS] :  [:H , :HH] = W1       [H ,  :HH] = b1
#                          [:HH, HH:] = W2       [HH,  HH:] = b2
#   int_w  [H+NS, H]    :  [:H , :]   = Wh  (hidden half of the concat-linear)
#                          [H: , :]   = emb @ We + b_int  (pre-projected
#                                       strategy embeddings, bias folded in)
# ------------------------------------------------------------------------------
def fused_kernel(h_ref, selw_ref, intw_ref, out_ref):
    h = h_ref[...]                                   # [S, H]  (batch squeezed)
    selw = selw_ref[...]                             # [H+1, HH+NS]
    intw = intw_ref[...]                             # [H+NS, H]

    # -- strategy selector ------------------------------------------------------
    pooled = jnp.mean(h, axis=0, keepdims=True)      # [1, H]
    z1 = jnp.dot(pooled, selw[:H, :HH],
                 preferred_element_type=jnp.float32) + selw[H:H + 1, :HH]
    z1 = jnp.maximum(z1, 0.0)                        # ReLU (Dropout -> identity)
    logits = jnp.dot(z1, selw[:HH, HH:],
                     preferred_element_type=jnp.float32) + selw[HH:HH + 1, HH:]
    logits = logits / TEMPERATURE
    m = jnp.max(logits, axis=-1, keepdims=True)
    e = jnp.exp(logits - m)
    probs = e / jnp.sum(e, axis=-1, keepdims=True)   # [1, NS] — stays in vregs

    # -- argmax (first-max tie-break, matches torch) + threshold select ---------
    idx = lax.broadcasted_iota(jnp.int32, (1, NS), 1)
    max_prob = jnp.max(probs, axis=-1, keepdims=True)                  # [1, 1]
    arg = jnp.min(jnp.where(probs == max_prob, idx, NS),
                  axis=-1, keepdims=True)                              # [1, 1]
    sel = jnp.where(max_prob < SELECTION_THRESHOLD,
                    DEFAULT_STRATEGY_IDX, arg)                         # [1, 1]
    one_hot = (idx == sel).astype(jnp.float32)                         # [1, NS]

    # -- strategy integration ---------------------------------------------------
    # concat([h, emb[sel]]) @ [Wh; We] + b  ==  h @ Wh + (emb[sel] @ We + b)
    emb_contrib = jnp.dot(one_hot, intw[H:, :],
                          preferred_element_type=jnp.float32)          # [1, H]
    out = jnp.dot(h, intw[:H, :],
                  preferred_element_type=jnp.float32) + emb_contrib    # [S, H]
    # NOTE: last dim (H=32) < 128 lanes -> masked store; acceptable at toy size.
    out_ref[...] = out.astype(out_ref.dtype)


def adaptive_reasoning_forward(h, sel_w, int_w):
    if not ENABLED:
        return h
    assert h.shape[0] == 1, "forward's .item() semantics imply batch == 1"
    return pl.pallas_call(
        fused_kernel,
        out_shape=jax.ShapeDtypeStruct((B, S, H), jnp.float32),
        grid_spec=pltpu.PrefetchScalarGridSpec(
            num_scalar_prefetch=0,
            grid=(1,),
            in_specs=[
                pl.BlockSpec((pl.Squeezed(), S, H), lambda i: (0, 0, 0)),
                pl.BlockSpec((H + 1, HH + NS), lambda i: (0, 0)),
                pl.BlockSpec((H + NS, H), lambda i: (0, 0)),
            ],
            out_specs=pl.BlockSpec((pl.Squeezed(), S, H), lambda i: (0, 0, 0)),
        ),
    )(h, sel_w, int_w)


# ------------------------------------------------------------------------------
# One-time wrapper-side packing (weight-only; would be hoisted/folded in prod).
# ------------------------------------------------------------------------------
def pack_params(params):
    sel_w = jnp.zeros((H + 1, HH + NS), jnp.float32)
    sel_w = sel_w.at[:H, :HH].set(params["w1"])
    sel_w = sel_w.at[H, :HH].set(params["b1"][0])
    sel_w = sel_w.at[:HH, HH:].set(params["w2"])
    sel_w = sel_w.at[HH, HH:].set(params["b2"][0])

    emb_proj = params["emb"] @ params["we"] + params["b_int"]    # [NS, H]
    int_w = jnp.concatenate([params["wh"], emb_proj], axis=0)    # [H+NS, H]
    return sel_w, int_w


# ------------------------------------------------------------------------------
# Pure-JAX reference (mirrors the PyTorch forward exactly, on UNPACKED params)
# ------------------------------------------------------------------------------
def reference_forward(h, params):
    pooled = h.mean(axis=1)
    z1 = jnp.maximum(pooled @ params["w1"] + params["b1"][0], 0.0)
    logits = (z1 @ params["w2"] + params["b2"][0]) / TEMPERATURE
    probs = jax.nn.softmax(logits, axis=-1)
    max_idx = jnp.argmax(probs[0])
    max_prob = probs[0, max_idx]
    idx = jnp.where(max_prob < SELECTION_THRESHOLD, DEFAULT_STRATEGY_IDX, max_idx)
    emb = params["emb"][idx]                                        # [E]
    emb_b = jnp.broadcast_to(emb, (B, S, E))
    aug = jnp.concatenate([h, emb_b], axis=-1)                      # [B, S, H+E]
    w_full = jnp.concatenate([params["wh"], params["we"]], axis=0)  # [H+E, H]
    return aug @ w_full + params["b_int"][0]


# ------------------------------------------------------------------------------
def make_params(key):
    ks = jax.random.split(key, 8)
    scale = 0.05
    return {
        # nn.Embedding(num_strategies, E)
        "emb": scale * jax.random.normal(ks[0], (NS, E), jnp.float32),
        # strategy_selector: Linear(H, H//2) -> ReLU -> Dropout -> Linear(H//2, NS)
        "w1": scale * jax.random.normal(ks[1], (H, HH), jnp.float32),
        "b1": scale * jax.random.normal(ks[2], (1, HH), jnp.float32),
        "w2": scale * jax.random.normal(ks[3], (HH, NS), jnp.float32),
        "b2": scale * jax.random.normal(ks[4], (1, NS), jnp.float32),
        # strategy_integration: Linear(H + E, H), split along input dim
        "wh": scale * jax.random.normal(ks[5], (H, H), jnp.float32),
        "we": scale * jax.random.normal(ks[6], (E, H), jnp.float32),
        "b_int": scale * jax.random.normal(ks[7], (1, H), jnp.float32),
    }


if __name__ == "__main__":
    key = jax.random.PRNGKey(0)
    pkey, xkey = jax.random.split(key)
    params = make_params(pkey)
    hidden_states = jax.random.normal(xkey, (B, S, H), jnp.float32)

    sel_w, int_w = pack_params(params)
    out = adaptive_reasoning_forward(hidden_states, sel_w, int_w)
    out = jax.block_until_ready(out)

    ref = reference_forward(hidden_states, params)
    np.testing.assert_allclose(np.asarray(out), np.asarray(ref),
                               rtol=1e-5, atol=1e-5)
    print("KERNEL_OK")
</pallas_src>

<mosaic_0001>
module attributes {stable_mosaic.version = 11 : i64} {
  func.func @fused_kernel(%arg0: i32, %arg1: memref<1x8x32xf32, #tpu.memory_space<vmem>>, %arg2: memref<33x27xf32, #tpu.memory_space<vmem>>, %arg3: memref<43x32xf32, #tpu.memory_space<vmem>>, %arg4: memref<1x8x32xf32, #tpu.memory_space<vmem>>) attributes {dimension_semantics = [#tpu.dimension_semantics<arbitrary>], iteration_bounds = array<i64: 1>, scalar_prefetch = 0 : i64, scratch_operands = 0 : i64, tpu.core_type = #tpu.core_type<tc>, window_params = [{pipeline_mode = #tpu.pipeline_mode<synchronous>, transform_indices = @transform_0, window_bounds = array<i64: 1, 8, 32>}, {pipeline_mode = #tpu.pipeline_mode<synchronous>, transform_indices = @transform_1, window_bounds = array<i64: 33, 27>}, {pipeline_mode = #tpu.pipeline_mode<synchronous>, transform_indices = @transform_2, window_bounds = array<i64: 43, 32>}, {pipeline_mode = #tpu.pipeline_mode<synchronous>, transform_indices = @transform_3, window_bounds = array<i64: 1, 8, 32>}]} {
    %c0 = arith.constant 0 : index
    %c0_0 = arith.constant 0 : index
    %c0_1 = arith.constant 0 : index
    %0 = vector.load %arg1[%c0, %c0_0, %c0_1] : memref<1x8x32xf32, #tpu.memory_space<vmem>>, vector<1x8x32xf32>
    %1 = vector.shape_cast %0 : vector<1x8x32xf32> to vector<8x32xf32>
    %c0_2 = arith.constant 0 : index
    %c0_3 = arith.constant 0 : index
    %2 = vector.load %arg2[%c0_2, %c0_3] : memref<33x27xf32, #tpu.memory_space<vmem>>, vector<33x27xf32>
    %c0_4 = arith.constant 0 : index
    %c0_5 = arith.constant 0 : index
    %3 = vector.load %arg3[%c0_4, %c0_5] : memref<43x32xf32, #tpu.memory_space<vmem>>, vector<43x32xf32>
    %cst = arith.constant dense<0.000000e+00> : vector<32xf32>
    %4 = vector.multi_reduction <add>, %1, %cst [0] : vector<8x32xf32> to vector<32xf32>
    %5 = vector.shape_cast %4 : vector<32xf32> to vector<1x32xf32>
    %cst_6 = arith.constant 8.000000e+00 : f32
    %6 = vector.broadcast %cst_6 : f32 to vector<1x32xf32>
    %7 = arith.divf %5, %6 : vector<1x32xf32>
    %8 = vector.extract_strided_slice %2 {offsets = [0, 0], sizes = [32, 16], strides = [1, 1]} : vector<33x27xf32> to vector<32x16xf32>
    %cst_7 = arith.constant dense<0.000000e+00> : vector<1x16xf32>
    %9 = tpu.matmul %7, %8, %cst_7 {dimension_numbers = #tpu.dot_dimension_numbers<[1], [0], [0], [1], [0, 0, 1, 1], [], []>} : vector<1x32xf32>, vector<32x16xf32>, vector<1x16xf32> -> vector<1x16xf32>
    %10 = vector.extract_strided_slice %2 {offsets = [32, 0], sizes = [1, 16], strides = [1, 1]} : vector<33x27xf32> to vector<1x16xf32>
    %11 = arith.addf %9, %10 : vector<1x16xf32>
    %cst_8 = arith.constant 0.000000e+00 : f32
    %12 = vector.broadcast %cst_8 : f32 to vector<1x16xf32>
    %13 = arith.maximumf %11, %12 : vector<1x16xf32>
    %14 = vector.extract_strided_slice %2 {offsets = [0, 16], sizes = [16, 11], strides = [1, 1]} : vector<33x27xf32> to vector<16x11xf32>
    %cst_9 = arith.constant dense<0.000000e+00> : vector<1x11xf32>
    %15 = tpu.matmul %13, %14, %cst_9 {dimension_numbers = #tpu.dot_dimension_numbers<[1], [0], [0], [1], [0, 0, 1, 1], [], []>} : vector<1x16xf32>, vector<16x11xf32>, vector<1x11xf32> -> vector<1x11xf32>
    %16 = vector.extract_strided_slice %2 {offsets = [16, 16], sizes = [1, 11], strides = [1, 1]} : vector<33x27xf32> to vector<1x11xf32>
    %17 = arith.addf %15, %16 : vector<1x11xf32>
    %cst_10 = arith.constant 8.000000e-01 : f32
    %18 = vector.broadcast %cst_10 : f32 to vector<1x11xf32>
    %19 = arith.divf %17, %18 : vector<1x11xf32>
    %cst_11 = arith.constant dense<0xFF800000> : vector<1xf32>
    %20 = vector.multi_reduction <maximumf>, %19, %cst_11 [1] : vector<1x11xf32> to vector<1xf32>
    %21 = vector.shape_cast %20 : vector<1xf32> to vector<1x1xf32>
    %22 = vector.broadcast %21 : vector<1x1xf32> to vector<1x11xf32>
    %23 = arith.subf %19, %22 : vector<1x11xf32>
    %24 = math.exp %23 : vector<1x11xf32>
    %cst_12 = arith.constant dense<0.000000e+00> : vector<1xf32>
    %25 = vector.multi_reduction <add>, %24, %cst_12 [1] : vector<1x11xf32> to vector<1xf32>
    %26 = vector.shape_cast %25 : vector<1xf32> to vector<1x1xf32>
    %27 = vector.broadcast %26 : vector<1x1xf32> to vector<1x11xf32>
    %28 = arith.divf %24, %27 : vector<1x11xf32>
    %29 = tpu.iota {dimensions = array<i32: 1>} : vector<1x11xi32>
    %cst_13 = arith.constant dense<0xFF800000> : vector<1xf32>
    %30 = vector.multi_reduction <maximumf>, %28, %cst_13 [1] : vector<1x11xf32> to vector<1xf32>
    %31 = vector.shape_cast %30 : vector<1xf32> to vector<1x1xf32>
    %32 = vector.broadcast %31 : vector<1x1xf32> to vector<1x11xf32>
    %33 = arith.cmpf oeq, %28, %32 : vector<1x11xf32>
    %c11_i32 = arith.constant 11 : i32
    %34 = vector.broadcast %c11_i32 : i32 to vector<1x11xi32>
    %35 = arith.select %33, %29, %34 : vector<1x11xi1>, vector<1x11xi32>
    %cst_14 = arith.constant dense<2147483647> : vector<1xi32>
    %36 = vector.multi_reduction <minsi>, %35, %cst_14 [1] : vector<1x11xi32> to vector<1xi32>
    %37 = vector.shape_cast %36 : vector<1xi32> to vector<1x1xi32>
    %cst_15 = arith.constant 2.000000e-01 : f32
    %38 = vector.broadcast %cst_15 : f32 to vector<1x1xf32>
    %39 = arith.cmpf olt, %31, %38 : vector<1x1xf32>
    %c0_i32 = arith.constant 0 : i32
    %40 = vector.broadcast %c0_i32 : i32 to vector<1x1xi32>
    %41 = arith.select %39, %40, %37 : vector<1x1xi1>, vector<1x1xi32>
    %42 = vector.broadcast %41 : vector<1x1xi32> to vector<1x11xi32>
    %43 = arith.cmpi eq, %29, %42 : vector<1x11xi32>
    %44 = arith.extui %43 : vector<1x11xi1> to vector<1x11xi32>
    %45 = arith.sitofp %44 : vector<1x11xi32> to vector<1x11xf32>
    %46 = vector.extract_strided_slice %3 {offsets = [32, 0], sizes = [11, 32], strides = [1, 1]} : vector<43x32xf32> to vector<11x32xf32>
    %cst_16 = arith.constant dense<0.000000e+00> : vector<1x32xf32>
    %47 = tpu.matmul %45, %46, %cst_16 {dimension_numbers = #tpu.dot_dimension_numbers<[1], [0], [0], [1], [0, 0, 1, 1], [], []>} : vector<1x11xf32>, vector<11x32xf32>, vector<1x32xf32> -> vector<1x32xf32>
    %48 = vector.extract_strided_slice %3 {offsets = [0, 0], sizes = [32, 32], strides = [1, 1]} : vector<43x32xf32> to vector<32x32xf32>
    %cst_17 = arith.constant dense<0.000000e+00> : vector<8x32xf32>
    %49 = tpu.matmul %1, %48, %cst_17 {dimension_numbers = #tpu.dot_dimension_numbers<[1], [0], [0], [1], [0, 0, 1, 1], [], []>} : vector<8x32xf32>, vector<32x32xf32>, vector<8x32xf32> -> vector<8x32xf32>
    %50 = vector.broadcast %47 : vector<1x32xf32> to vector<8x32xf32>
    %51 = arith.addf %49, %50 : vector<8x32xf32>
    %c0_18 = arith.constant 0 : index
    %c0_19 = arith.constant 0 : index
    %c0_20 = arith.constant 0 : index
    %52 = vector.load %arg4[%c0_18, %c0_19, %c0_20] : memref<1x8x32xf32, #tpu.memory_space<vmem>>, vector<1x8x32xf32>
    %53 = vector.shape_cast %52 : vector<1x8x32xf32> to vector<8x32xf32>
    %54 = vector.shape_cast %51 : vector<8x32xf32> to vector<1x8x32xf32>
    tpu.vector_store %arg4[%c0_18, %c0_19, %c0_20], %54 {strides = array<i32>} : memref<1x8x32xf32, #tpu.memory_space<vmem>>, vector<1x8x32xf32>,
    return
  }
  func.func @transform_0(%arg0: i32) -> (i32, i32, i32) {
    %c0_i32 = arith.constant 0 : i32
    %c0_i32_0 = arith.constant 0 : i32
    %c0_i32_1 = arith.constant 0 : i32
    %c0_i32_2 = arith.constant 0 : i32
    return %c0_i32, %c0_i32_0, %c0_i32_1 : i32, i32, i32
  }
  func.func @transform_1(%arg0: i32) -> (i32, i32) {
    %c0_i32 = arith.constant 0 : i32
    %c0_i32_0 = arith.constant 0 : i32
    %c0_i32_1 = arith.constant 0 : i32
    return %c0_i32, %c0_i32_0 : i32, i32
  }
  func.func @transform_2(%arg0: i32) -> (i32, i32) {
    %c0_i32 = arith.constant 0 : i32
    %c0_i32_0 = arith.constant 0 : i32
    %c0_i32_1 = arith.constant 0 : i32
    return %c0_i32, %c0_i32_0 : i32, i32
  }
  func.func @transform_3(%arg0: i32) -> (i32, i32, i32) {
    %c0_i32 = arith.constant 0 : i32
    %c0_i32_0 = arith.constant 0 : i32
    %c0_i32_1 = arith.constant 0 : i32
    %c0_i32_2 = arith.constant 0 : i32
    return %c0_i32, %c0_i32_0, %c0_i32_1 : i32, i32, i32
  }
}

</mosaic_0001>

<llo_original>
// kernel: tpu_custom_call.1
$region0: #{tpu_custom_call.1}
  #allocation0 [shape = 'u32[]', space=smem, size = 0x4, offset = 0x4, fixed_abs, tag = 'smem constant byte address 0x4 - core index']
  #allocation1 [shape = 'u32[144,128]{1,0:T(1,128)}', space=vmem, size = 0x12000, scoped, tag = 'internal scratch']
  %s0 = inlined_call_operand.vmem [shape: f32[1,8,32], index: 0, kind: input, shape index: {}]
  %s1 = inlined_call_operand.vmem [shape: f32[33,27], index: 1, kind: input, shape index: {}]
  %s2 = inlined_call_operand.vmem [shape: f32[43,32], index: 2, kind: input, shape index: {}]
  %s3 = inlined_call_operand.hbm [shape: f32[1,8,32], index: 3, kind: output, shape index: {}]
  %s4 = sld [smem:[#allocation0]]
  $region22: #{tpu_custom_call.1} parent=0
    _
  %s6 = ssub.s32 1, %s4
  %s7 = scalar_select 0, %s6, %s4
  $region1: #{tpu_custom_call.1} parent=0
    #allocation2 [shape = 'u8[4096]{0}', space=vmem, size = 0x1000, scoped, tag = 'output window, operand 0, single buffered']
    #allocation3 [shape = 's32[1]{0}', space=sflag, size = 0x4, scoped, tag = 'scoped memory for tpu_custom_call.1']
    %8 = vsyncpa [#allocation3], 0
    // Predicated region
    $region2: #{tpu_custom_call.1} parent=1 // pred_check
      _
    $region3: #{tpu_custom_call.1} parent=1 // pred_check_branch
      %10 = sbr.rel (0) target = $region5
    $region4: #{tpu_custom_call.1} parent=1 // pred_region
      _
    $region5: #{tpu_custom_call.1} parent=1 // pred_fallthru
      _
    // Predicated region
    $region6: #{tpu_custom_call.1} parent=1 // pred_check
      _
    $region7: #{tpu_custom_call.1} parent=1 // pred_check_branch
      %12 = sbr.rel (0) target = $region9
    $region8: #{tpu_custom_call.1} parent=1 // pred_region
      _
    $region9: #{tpu_custom_call.1} parent=1 // pred_fallthru
      _
    // Predicated region
    $region10: #{tpu_custom_call.1} parent=1 // pred_check
      _
    $region11: #{tpu_custom_call.1} parent=1 // pred_check_branch
      %14 = sbr.rel (0) target = $region13
    $region12: #{tpu_custom_call.1} parent=1 // pred_region
      _
    $region13: #{tpu_custom_call.1} parent=1 // pred_fallthru
      _
    %v15 = vld [vmem:[%s0] sm:$0xff]
    %v16 = vld [vmem:[%s1] sm:$0xff]
    %v17 = vld [vmem:[%s1 + $0x8] sm:$0xff]
    %v18 = vld [vmem:[%s1 + $0x10] sm:$0xff]
    %v19 = vld [vmem:[%s1 + $0x18] sm:$0xff]
    %v20 = vld [vmem:[%s1 + $0x20] sm:$0x1]
    %v21 = vld [vmem:[%s2] sm:$0xff]
    %v22 = vld [vmem:[%s2 + $0x8] sm:$0xff]
    %v23 = vld [vmem:[%s2 + $0x10] sm:$0xff]
    %v24 = vld [vmem:[%s2 + $0x18] sm:$0xff]
    %v25 = vld [vmem:[%s2 + $0x20] sm:$0xff]
    %v26 = vld [vmem:[%s2 + $0x28] sm:$0x7]
    %vm27 = vcmask 261120
    %v28 = vsel %vm27, %v15, 0.0
    %v29 = vrot.slane %v28, 4
    %v30 = vadd.f32 %v28, %v29
    %v31 = vrot.slane %v30, 2
    %v32 = vadd.f32 %v30, %v31
    %v33 = vrot.slane %v32, 1
    %v34 = vadd.f32 %v32, %v33
    %v35 = vrcp.pop 8.0
    %v36 = vmul.f32 %v34, %v35
    %v38 = vsel %vm27, %v36, 0
    %40 = vmatprep.subr.mxu0 0.0
    %41 = vmatpush1.msra.mxu0 %v16
    %42 = vmatprep.subr.mxu0 0.0
    %43 = vmatpush1.msra.mxu0 %v17
    %44 = vmatprep.subr.mxu0 0.0
    %45 = vmatpush1.msra.mxu0 %v18
    %46 = vmatprep.subr.mxu0 0.0
    %47 = vmatpush1.msra.mxu0 %v19
    %48 = vmatprep.subr.mxu0 0.0
    %49 = vmatpush1.msra.mxu0 0.0
    %50 = vmatprep.subr.mxu0 0.0
    %51 = vmatpush1.msra.mxu0 0.0
    %52 = vmatprep.subr.mxu0 0.0
    %53 = vmatpush1.msra.mxu0 0.0
    %54 = vmatprep.subr.mxu0 0.0
    %55 = vmatpush1.msra.mxu0 0.0
    %56 = vmatprep.subr.mxu0 0.0
    %57 = vmatpush1.msra.mxu0 0.0
    %58 = vmatprep.subr.mxu0 0.0
    %59 = vmatpush1.msra.mxu0 0.0
    %60 = vmatprep.subr.mxu0 0.0
    %61 = vmatpush1.msra.mxu0 0.0
    %62 = vmatprep.subr.mxu0 0.0
    %63 = vmatpush1.msra.mxu0 0.0
    %64 = vmatprep.subr.mxu0 0.0
    %65 = vmatpush1.msra.mxu0 0.0
    %66 = vmatprep.subr.mxu0 0.0
    %67 = vmatpush1.msra.mxu0 0.0
    %68 = vmatprep.subr.mxu0 0.0
    %69 = vmatpush1.msra.mxu0 0.0
    %70 = vmatprep.subr.mxu0 0.0
    %71 = vmatpush1.msra.mxu0 0.0
    %72 = vmatprep.subr.mxu0 0.0
    %73 = vmatpush1.msra.mxu0 0.0
    %74 = vmatprep.subr.mxu0 0.0
    %75 = vmatpush1.msra.mxu0 0.0
    %76 = vmatprep.subr.mxu0 0.0
    %77 = vmatpush1.msra.mxu0 0.0
    %78 = vmatprep.subr.mxu0 0.0
    %79 = vmatpush1.msra.mxu0 0.0
    %80 = vmatprep.subr.mxu0 0.0
    %81 = vmatpush1.msra.mxu0 0.0
    %82 = vmatprep.subr.mxu0 0.0
    %83 = vmatpush1.msra.mxu0 0.0
    %84 = vmatprep.subr.mxu0 0.0
    %85 = vmatpush1.msra.mxu0 0.0
    %86 = vmatprep.subr.mxu0 0.0
    %87 = vmatpush1.msra.mxu0 0.0
    %88 = vmatprep.subr.mxu0 0.0
    %89 = vmatpush1.msra.mxu0 0.0
    %90 = vmatprep.subr.mxu0 0.0
    %91 = vmatpush1.msra.mxu0 0.0
    %92 = vmatprep.subr.mxu0 0.0
    %93 = vmatpush1.msra.mxu0 0.0
    %94 = vmatprep.subr.mxu0 0.0
    %95 = vmatpush1.msra.mxu0 0.0
    %96 = vmatprep.subr.mxu0 0.0
    %97 = vmatpush1.msra.mxu0 0.0
    %98 = vmatprep.subr.mxu0 0.0
    %99 = vmatpush1.msra.mxu0 0.0
    %100 = vmatprep.subr.mxu0 0.0
    %101 = vmatpush1.msra.mxu0 0.0
    %102 = vmatprep.subr.mxu0 0.0
    %103 = vmatpush1.msra.mxu0 0.0
    %104 = vmatprep.mubr.f32.mxu0 0.0
    %105 = vmatmul.mubr.f32.gmra.mrb[0].mxu0 %v38
    %v106 = vpop.f32.mrb[0].mxu0
    %v107 = vadd.f32 %v20, %v106
    %v108 = vpop.f32.mrb[0].mxu0
    %109 = vdwg.mxu0
    %v110 = vmax.f32 %v107, 0.0
    %113 = vrot.lane.b32.xlu0 %v16, 112
    %v114 = vpop.permute.xlu0 %113
    %115 = vrot.lane.b32.xlu0 %v17, 112
    %v116 = vpop.permute.xlu0 %115
    %120 = vrot.lane.b32.xlu0 %v18, 112
    %v121 = vpop.permute.xlu0 %120
    %vm123 = vcmask 130048
    %v125 = vsel %vm123, %v110, 0
    %127 = vmatprep.subr.mxu0 0.0
    %128 = vmatpush1.msra.mxu0 %v114
    %129 = vmatprep.subr.mxu0 0.0
    %130 = vmatpush1.msra.mxu0 %v116
    %131 = vmatprep.subr.mxu0 0.0
    %132 = vmatpush1.msra.mxu0 0.0
    %133 = vmatprep.subr.mxu0 0.0
    %134 = vmatpush1.msra.mxu0 0.0
    %135 = vmatprep.subr.mxu0 0.0
    %136 = vmatpush1.msra.mxu0 0.0
    %137 = vmatprep.subr.mxu0 0.0
    %138 = vmatpush1.msra.mxu0 0.0
    %139 = vmatprep.subr.mxu0 0.0
    %140 = vmatpush1.msra.mxu0 0.0
    %141 = vmatprep.subr.mxu0 0.0
    %142 = vmatpush1.msra.mxu0 0.0
    %143 = vmatprep.subr.mxu0 0.0
    %144 = vmatpush1.msra.mxu0 0.0
    %145 = vmatprep.subr.mxu0 0.0
    %146 = vmatpush1.msra.mxu0 0.0
    %147 = vmatprep.subr.mxu0 0.0
    %148 = vmatpush1.msra.mxu0 0.0
    %149 = vmatprep.subr.mxu0 0.0
    %150 = vmatpush1.msra.mxu0 0.0
    %151 = vmatprep.subr.mxu0 0.0
    %152 = vmatpush1.msra.mxu0 0.0
    %153 = vmatprep.subr.mxu0 0.0
    %154 = vmatpush1.msra.mxu0 0.0
    %155 = vmatprep.subr.mxu0 0.0
    %156 = vmatpush1.msra.mxu0 0.0
    %157 = vmatprep.subr.mxu0 0.0
    %158 = vmatpush1.msra.mxu0 0.0
    %159 = vmatprep.subr.mxu0 0.0
    %160 = vmatpush1.msra.mxu0 0.0
    %161 = vmatprep.subr.mxu0 0.0
    %162 = vmatpush1.msra.mxu0 0.0
    %163 = vmatprep.subr.mxu0 0.0
    %164 = vmatpush1.msra.mxu0 0.0
    %165 = vmatprep.subr.mxu0 0.0
    %166 = vmatpush1.msra.mxu0 0.0
    %167 = vmatprep.subr.mxu0 0.0
    %168 = vmatpush1.msra.mxu0 0.0
    %169 = vmatprep.subr.mxu0 0.0
    %170 = vmatpush1.msra.mxu0 0.0
    %171 = vmatprep.subr.mxu0 0.0
    %172 = vmatpush1.msra.mxu0 0.0
    %173 = vmatprep.subr.mxu0 0.0
    %174 = vmatpush1.msra.mxu0 0.0
    %175 = vmatprep.subr.mxu0 0.0
    %176 = vmatpush1.msra.mxu0 0.0
    %177 = vmatprep.subr.mxu0 0.0
    %178 = vmatpush1.msra.mxu0 0.0
    %179 = vmatprep.subr.mxu0 0.0
    %180 = vmatpush1.msra.mxu0 0.0
    %181 = vmatprep.subr.mxu0 0.0
    %182 = vmatpush1.msra.mxu0 0.0
    %183 = vmatprep.subr.mxu0 0.0
    %184 = vmatpush1.msra.mxu0 0.0
    %185 = vmatprep.subr.mxu0 0.0
    %186 = vmatpush1.msra.mxu0 0.0
    %187 = vmatprep.subr.mxu0 0.0
    %188 = vmatpush1.msra.mxu0 0.0
    %189 = vmatprep.subr.mxu0 0.0
    %190 = vmatpush1.msra.mxu0 0.0
    %191 = vmatprep.mubr.f32.mxu0 0.0
    %192 = vmatmul.mubr.f32.gmra.mrb[0].mxu0 %v125
    %v193 = vpop.f32.mrb[0].mxu0
    %v194 = vadd.f32 %v121, %v193
    %v195 = vpop.f32.mrb[0].mxu0
    %196 = vdwg.mxu0
    %v197 = vrcp.pop 0.8
    %v198 = vmul.f32 %v194, %v197
    %vm199 = vcmask 81920
    %v200 = vsel %vm199, %v198, -inf
    %201 = vmax.xlane.f32.xlu0 %v200
    %v202 = vpop.xlane.xlu0 %201
    %v203 = vsub.f32 %v198, %v202
    %v204 = vmul.f32 %v203, 1.442695
    %v205 = vpow.pop %v204
    %v206 = vsel %vm199, %v205, 0.0
    %207 = vadd.xlane.f32.xlu0 %v206
    %v208 = vpop.xlane.xlu0 %207
    %v209 = vrcp.pop %v208
    %v210 = vmul.f32 %v205, %v209
    %v211 = vlaneseq
    %v212 = vand.u32 %v211, 127
    %v213 = vsel %vm199, %v210, -inf
    %214 = vmax.xlane.f32.xlu0 %v213
    %v215 = vpop.xlane.xlu0 %214
    %vm216 = vcmp.eq.f32.partialorder %v210, %v215
    %v217 = vsel %vm216, %v212, 11
    %v218 = vsel %vm199, %v217, 2147483647
    %v219 = vand.u32 %v218, 65535
    %v220 = vshra.s32 %v218, 16
    %v221 = vcvt.s32.f32 %v219
    %v222 = vcvt.s32.f32 %v220
    %223 = vmin.xlane.f32.xlu0 %v222
    %v224 = vpop.xlane.xlu0 %223
    %vm225 = vcmp.eq.f32.partialorder %v222, %v224
    %v226 = vsel %vm225, %v221, inf
    %227 = vmin.xlane.f32.xlu0 %v226
    %v228 = vpop.xlane.xlu0 %227
    %v229 = vcvt.f32.s32 %v228
    %v230 = vcvt.f32.s32 %v224
    %v231 = vshll.u32 %v230, 16
    %v232 = vadd.s32 %v231, %v229
    %vm233 = vcmp.lt.f32.partialorder %v215, 0.2
    %v234 = vsel %vm233, 0, %v232
    %vm235 = vcmp.eq.s32.totalorder %v212, %v234
    %v236 = vsel %vm235, 1, 0
    %v237 = vcvt.s32.f32 %v236
    %vm238 = vcmask 89088
    %v240 = vsel %vm238, %v237, 0
    %vm242 = vcmask 1042432
    %v244 = vsel %vm242, %v26, 0
    %246 = vmatprep.subr.mxu0 0.0
    %247 = vmatpush1.msra.mxu0 %v25
    %248 = vmatprep.subr.mxu0 0.0
    %249 = vmatpush1.msra.mxu0 %v244
    %250 = vmatprep.subr.mxu0 0.0
    %251 = vmatpush1.msra.mxu0 0.0
    %252 = vmatprep.subr.mxu0 0.0
    %253 = vmatpush1.msra.mxu0 0.0
    %254 = vmatprep.subr.mxu0 0.0
    %255 = vmatpush1.msra.mxu0 0.0
    %256 = vmatprep.subr.mxu0 0.0
    %257 = vmatpush1.msra.mxu0 0.0
    %258 = vmatprep.subr.mxu0 0.0
    %259 = vmatpush1.msra.mxu0 0.0
    %260 = vmatprep.subr.mxu0 0.0
    %261 = vmatpush1.msra.mxu0 0.0
    %262 = vmatprep.subr.mxu0 0.0
    %263 = vmatpush1.msra.mxu0 0.0
    %264 = vmatprep.subr.mxu0 0.0
    %265 = vmatpush1.msra.mxu0 0.0
    %266 = vmatprep.subr.mxu0 0.0
    %267 = vmatpush1.msra.mxu0 0.0
    %268 = vmatprep.subr.mxu0 0.0
    %269 = vmatpush1.msra.mxu0 0.0
    %270 = vmatprep.subr.mxu0 0.0
    %271 = vmatpush1.msra.mxu0 0.0
    %272 = vmatprep.subr.mxu0 0.0
    %273 = vmatpush1.msra.mxu0 0.0
    %274 = vmatprep.subr.mxu0 0.0
    %275 = vmatpush1.msra.mxu0 0.0
    %276 = vmatprep.subr.mxu0 0.0
    %277 = vmatpush1.msra.mxu0 0.0
    %278 = vmatprep.subr.mxu0 0.0
    %279 = vmatpush1.msra.mxu0 0.0
    %280 = vmatprep.subr.mxu0 0.0
    %281 = vmatpush1.msra.mxu0 0.0
    %282 = vmatprep.subr.mxu0 0.0
    %283 = vmatpush1.msra.mxu0 0.0
    %284 = vmatprep.subr.mxu0 0.0
    %285 = vmatpush1.msra.mxu0 0.0
    %286 = vmatprep.subr.mxu0 0.0
    %287 = vmatpush1.msra.mxu0 0.0
    %288 = vmatprep.subr.mxu0 0.0
    %289 = vmatpush1.msra.mxu0 0.0
    %290 = vmatprep.subr.mxu0 0.0
    %291 = vmatpush1.msra.mxu0 0.0
    %292 = vmatprep.subr.mxu0 0.0
    %293 = vmatpush1.msra.mxu0 0.0
    %294 = vmatprep.subr.mxu0 0.0
    %295 = vmatpush1.msra.mxu0 0.0
    %296 = vmatprep.subr.mxu0 0.0
    %297 = vmatpush1.msra.mxu0 0.0
    %298 = vmatprep.subr.mxu0 0.0
    %299 = vmatpush1.msra.mxu0 0.0
    %300 = vmatprep.subr.mxu0 0.0
    %301 = vmatpush1.msra.mxu0 0.0
    %302 = vmatprep.subr.mxu0 0.0
    %303 = vmatpush1.msra.mxu0 0.0
    %304 = vmatprep.subr.mxu0 0.0
    %305 = vmatpush1.msra.mxu0 0.0
    %306 = vmatprep.subr.mxu0 0.0
    %307 = vmatpush1.msra.mxu0 0.0
    %308 = vmatprep.subr.mxu0 0.0
    %309 = vmatpush1.msra.mxu0 0.0
    %310 = vmatprep.mubr.f32.mxu0 0.0
    %311 = vmatmul.mubr.f32.gmra.mrb[0].mxu0 %v240
    %v312 = vpop.f32.mrb[0].mxu0
    %v313 = vadd.f32 0.0, %v312
    %v314 = vpop.f32.mrb[0].mxu0
    %315 = vdwg.mxu0
    %v316 = vlaneseq
    %v317 = vshrl.u32 %v316, 7
    %v318 = vsub.s32 0, %v317
    %v319 = vrot.slane %v313, %v318
    %v321 = vsel %vm27, %v15, 0
    %323 = vmatprep.subr.mxu0 0.0
    %324 = vmatpush1.msra.mxu0 %v21
    %325 = vmatprep.subr.mxu0 0.0
    %326 = vmatpush1.msra.mxu0 %v22
    %327 = vmatprep.subr.mxu0 0.0
    %328 = vmatpush1.msra.mxu0 %v23
    %329 = vmatprep.subr.mxu0 0.0
    %330 = vmatpush1.msra.mxu0 %v24
    %331 = vmatprep.subr.mxu0 0.0
    %332 = vmatpush1.msra.mxu0 0.0
    %333 = vmatprep.subr.mxu0 0.0
    %334 = vmatpush1.msra.mxu0 0.0
    %335 = vmatprep.subr.mxu0 0.0
    %336 = vmatpush1.msra.mxu0 0.0
    %337 = vmatprep.subr.mxu0 0.0
    %338 = vmatpush1.msra.mxu0 0.0
    %339 = vmatprep.subr.mxu0 0.0
    %340 = vmatpush1.msra.mxu0 0.0
    %341 = vmatprep.subr.mxu0 0.0
    %342 = vmatpush1.msra.mxu0 0.0
    %343 = vmatprep.subr.mxu0 0.0
    %344 = vmatpush1.msra.mxu0 0.0
    %345 = vmatprep.subr.mxu0 0.0
    %346 = vmatpush1.msra.mxu0 0.0
    %347 = vmatprep.subr.mxu0 0.0
    %348 = vmatpush1.msra.mxu0 0.0
    %349 = vmatprep.subr.mxu0 0.0
    %350 = vmatpush1.msra.mxu0 0.0
    %351 = vmatprep.subr.mxu0 0.0
    %352 = vmatpush1.msra.mxu0 0.0
    %353 = vmatprep.subr.mxu0 0.0
    %354 = vmatpush1.msra.mxu0 0.0
    %355 = vmatprep.subr.mxu0 0.0
    %356 = vmatpush1.msra.mxu0 0.0
    %357 = vmatprep.subr.mxu0 0.0
    %358 = vmatpush1.msra.mxu0 0.0
    %359 = vmatprep.subr.mxu0 0.0
    %360 = vmatpush1.msra.mxu0 0.0
    %361 = vmatprep.subr.mxu0 0.0
    %362 = vmatpush1.msra.mxu0 0.0
    %363 = vmatprep.subr.mxu0 0.0
    %364 = vmatpush1.msra.mxu0 0.0
    %365 = vmatprep.subr.mxu0 0.0
    %366 = vmatpush1.msra.mxu0 0.0
    %367 = vmatprep.subr.mxu0 0.0
    %368 = vmatpush1.msra.mxu0 0.0
    %369 = vmatprep.subr.mxu0 0.0
    %370 = vmatpush1.msra.mxu0 0.0
    %371 = vmatprep.subr.mxu0 0.0
    %372 = vmatpush1.msra.mxu0 0.0
    %373 = vmatprep.subr.mxu0 0.0
    %374 = vmatpush1.msra.mxu0 0.0
    %375 = vmatprep.subr.mxu0 0.0
    %376 = vmatpush1.msra.mxu0 0.0
    %377 = vmatprep.subr.mxu0 0.0
    %378 = vmatpush1.msra.mxu0 0.0
    %379 = vmatprep.subr.mxu0 0.0
    %380 = vmatpush1.msra.mxu0 0.0
    %381 = vmatprep.subr.mxu0 0.0
    %382 = vmatpush1.msra.mxu0 0.0
    %383 = vmatprep.subr.mxu0 0.0
    %384 = vmatpush1.msra.mxu0 0.0
    %385 = vmatprep.subr.mxu0 0.0
    %386 = vmatpush1.msra.mxu0 0.0
    %387 = vmatprep.mubr.f32.mxu0 0.0
    %388 = vmatmul.mubr.f32.gmra.mrb[0].mxu0 %v321
    %v389 = vpop.f32.mrb[0].mxu0
    %v390 = vadd.f32 %v319, %v389
    %v391 = vpop.f32.mrb[0].mxu0
    %392 = vdwg.mxu0
    %393 = vst.msk [vmem:[#allocation2] sm:$0xff] %vm27, %v390
    // Predicated region
    $region14: #{tpu_custom_call.1} parent=1 // pred_check
      _
    $region15: #{tpu_custom_call.1} parent=1 // pred_check_branch
      %395 = sbr.rel (0) target = $region17
    $region16: #{tpu_custom_call.1} parent=1 // pred_region
      %s397 = ssub.s32 128, 128
      %398 = vsyncadd [#allocation3], %s397
      %s400 = sshll.u32 [#allocation2], 4
      %s401 = int_to_ptr.vmem [resolvable:$true] %s400
      %403 = dma.vmem_to_hbm [thread:$0]  %s401, 128, %s3, [#allocation3]
    $region17: #{tpu_custom_call.1} parent=1 // pred_fallthru
      _
    // Predicated region
    $region18: #{tpu_custom_call.1} parent=1 // pred_check
      _
    $region19: #{tpu_custom_call.1} parent=1 // pred_check_branch
      %405 = sbr.rel (0) target = $region21
    $region20: #{tpu_custom_call.1} parent=1 // pred_region
      %406 = dma.done [#allocation3], 128
    $region21: #{tpu_custom_call.1} parent=1 // pred_fallthru
      _
    %407 = vsyncpa [#allocation3], 1

</llo_original>
